<compile_context>
chip_gen: v5e
topology: v5e:2x2
jax: 0.10.0
libtpu: 0.0.40
codegen_flags: <defaults>
</compile_context>

<pallas_src>
import math

import jax
import jax.numpy as jnp
from jax.experimental import pallas as pl
from jax.experimental.pallas import tpu as pltpu

LN_EPS = 1e-5  # PyTorch nn.LayerNorm default eps


# --------------------------------------------------------------------------
# Tile-size selection from a per-generation VMEM budget
# --------------------------------------------------------------------------
def _vmem_budget_bytes():
    """Usable per-kernel VMEM budget: ~70% of physical VMEM (headroom for
    Mosaic internal scratch / semaphores).  64 MiB fallback (v7x per-core)."""
    try:
        cap = int(pltpu.get_tpu_info().vmem_capacity_bytes)
    except Exception:
        cap = 64 * 1024 * 1024
    return int(cap * 0.7)


def _pick_tile(n, cap, mult):
    """Largest divisor of n that is a multiple of `mult` and <= cap.
    Falls back to the smallest multiple-of-`mult` divisor, then to n itself
    (a full-dim block is always legal w.r.t. the (8,128) rule)."""
    cand = [d for d in range(mult, n + 1, mult) if n % d == 0]
    if not cand:
        return n
    fit = [d for d in cand if d <= cap]
    return max(fit) if fit else min(cand)


def _pick_col_tile(n_cols, o, cap):
    """Column tile (over j*O+o) for kernel 2: multiple of 128 and of O when
    possible, else multiple of 128, else the full width."""
    for mult in (math.lcm(128, o), 128):
        cand = [d for d in range(mult, n_cols + 1, mult) if n_cols % d == 0]
        if cand:
            fit = [d for d in cand if d <= cap]
            return max(fit) if fit else min(cand)
    return n_cols


def _stage1_row_tile(n, d_in, h, o, in_sz, st_sz, w_sz, budget):
    """Row tile tr for kernel 1 so that all (double-buffered) blocks — including
    the (tr, H*O) s2 output block and the (H, H*O) W2y block — fit `budget`."""
    fixed = 2 * (2 * 8 * d_in * 4                  # gamma, beta (sublane-padded)
                 + 2 * (d_in * h + 8 * h) * w_sz   # W_a/b_a, W_b/b_b
                 + h * h * o * w_sz)               # W2y
    per_row = 2 * (d_in * in_sz + h * st_sz + h * o * st_sz)  # feats, a, s2
    cap = max((budget - fixed) // per_row, 8)
    mult = 16 if st_sz == 2 else 8
    return _pick_tile(n, min(cap, 512), mult)


def _stage2_tiles(n, h, o, st_sz, out_sz, budget):
    """(ti, tn) for kernel 2: a block (ti, H), r block (H, tn), out (ti, tn)."""
    n_cols = n * o
    hw_tn_cap = 2048 if budget >= 60 * 1024 * 1024 else 1024
    mult = 16 if min(st_sz, out_sz) == 2 else 8
    ti = _pick_tile(n, 256, mult)
    tn = n_cols
    for _ in range(4):
        denom = h * st_sz + ti * out_sz + 4        # r col + out col + bias col
        tn_cap = max((budget // 2 - ti * h * st_sz) // denom, 1)
        tn = _pick_col_tile(n_cols, o, min(tn_cap, hw_tn_cap))
        total = 2 * (h * tn * st_sz + ti * h * st_sz + ti * tn * out_sz + tn * 4)
        if total <= budget or ti <= mult:
            break
        ti = _pick_tile(n, max(ti // 2, mult), mult)
    return ti, tn


# --------------------------------------------------------------------------
# Kernels
# --------------------------------------------------------------------------
def _ln_proj_stage1_kernel(x_ref, g_ref, bt_ref, wa_ref, ba_ref,
                           wb_ref, bb_ref, w2y_ref, a_ref, s2_ref):
    """Per (batch, row-tile): LayerNorm + project_in + first contraction (over y).
        s2[j, x*O + o] = sum_y b[j, y] * W2y[y, x*O + o]
    """
    x = x_ref[...].astype(jnp.float32)                        # (tr, D_in)
    mean = jnp.mean(x, axis=-1, keepdims=True)
    xc = x - mean
    var = jnp.mean(xc * xc, axis=-1, keepdims=True)
    xn = xc * jax.lax.rsqrt(var + LN_EPS)
    xn = xn * g_ref[...] + bt_ref[...]                        # (tr, D_in), f32
    xn_m = xn.astype(wa_ref.dtype)                            # bf16 operands if enabled
    a = jnp.dot(xn_m, wa_ref[...],
                preferred_element_type=jnp.float32) + ba_ref[...]
    a_ref[...] = a.astype(a_ref.dtype)
    bm = jnp.dot(xn_m, wb_ref[...],
                 preferred_element_type=jnp.float32) + bb_ref[...]   # (tr, H)
    s2 = jnp.dot(bm.astype(w2y_ref.dtype), w2y_ref[...],
                 preferred_element_type=jnp.float32)                 # (tr, H*O)
    s2_ref[...] = s2.astype(s2_ref.dtype)


def _stage2_kernel(a_ref, r_ref, bias_ref, o_ref):
    """Per (batch, j-col-tile, i-row-tile):
        out[i, c] = sum_x a[i, x] * r[x, c] + bias[c],   c = j*O + o
    """
    acc = jnp.dot(a_ref[...], r_ref[...], preferred_element_type=jnp.float32)
    o_ref[...] = (acc + bias_ref[...]).astype(o_ref.dtype)


# --------------------------------------------------------------------------
# Wrapper
# --------------------------------------------------------------------------
def learned_outer_forward(feats, params, *, use_bf16=False):
    gamma, beta = params["ln_gamma"], params["ln_beta"]
    w_in, b_in = params["w_in"], params["b_in"]          # (2H, D_in), (2H,)
    w_out, b_out = params["w_out"], params["b_out"]      # (O, H*H), (O,)

    B, N, d_in = feats.shape
    H = w_in.shape[0] // 2
    O = w_out.shape[0]

    op_dtype = jnp.bfloat16 if use_bf16 else jnp.float32   # MXU operands / weights
    st_dtype = jnp.bfloat16 if use_bf16 else jnp.float32   # a_act / s2 / r storage
    out_dtype = jnp.bfloat16 if use_bf16 else jnp.float32  # (B, N, N, O) output

    # ---- one-time parameter plumbing (XLA glue) ---------------------------
    w_a = w_in[:H, :].T.astype(op_dtype)                   # (D_in, H)  a-head
    w_b = w_in[H:, :].T.astype(op_dtype)                   # (D_in, H)  b-head
    b_a = b_in[:H].reshape(1, H).astype(jnp.float32)
    b_b = b_in[H:].reshape(1, H).astype(jnp.float32)
    g2 = gamma.reshape(1, d_in).astype(jnp.float32)
    bt2 = beta.reshape(1, d_in).astype(jnp.float32)
    # W2y[y, x*O + o] = W_out[o, x*H + y]
    w2y = (w_out.T.reshape(H, H, O).transpose(1, 0, 2)
           .reshape(H, H * O).astype(op_dtype))
    bias_tiled = jnp.tile(b_out.astype(jnp.float32), N).reshape(1, N * O)

    budget = _vmem_budget_bytes()
    in_sz = jnp.dtype(feats.dtype).itemsize
    op_sz = 2 if use_bf16 else 4
    st_sz = 2 if use_bf16 else 4
    out_sz = 2 if use_bf16 else 4

    # ---- Kernel 1: LayerNorm + project_in + first contraction -------------
    tr = _stage1_row_tile(N, d_in, H, O, in_sz, st_sz, op_sz, budget)
    flops1 = B * N * (6 * d_in + 4 * d_in * H + 2 * H * H * O)
    bytes1 = (B * N * d_in * in_sz + (2 * d_in + 2 * H) * 4
              + (2 * d_in * H + H * H * O) * op_sz
              + B * N * H * st_sz + B * N * H * O * st_sz)
    a_act, s2 = pl.pallas_call(
        _ln_proj_stage1_kernel,
        out_shape=(jax.ShapeDtypeStruct((B, N, H), st_dtype),
                   jax.ShapeDtypeStruct((B, N, H * O), st_dtype)),
        grid=(B, N // tr),
        in_specs=[
            pl.BlockSpec((None, tr, d_in), lambda b, t: (b, t, 0)),   # feats
            pl.BlockSpec((1, d_in), lambda b, t: (0, 0)),             # gamma
            pl.BlockSpec((1, d_in), lambda b, t: (0, 0)),             # beta
            pl.BlockSpec((d_in, H), lambda b, t: (0, 0)),             # W_a
            pl.BlockSpec((1, H), lambda b, t: (0, 0)),                # b_a
            pl.BlockSpec((d_in, H), lambda b, t: (0, 0)),             # W_b
            pl.BlockSpec((1, H), lambda b, t: (0, 0)),                # b_b
            pl.BlockSpec((H, H * O), lambda b, t: (0, 0)),            # W2y
        ],
        out_specs=(
            pl.BlockSpec((None, tr, H), lambda b, t: (b, t, 0)),
            pl.BlockSpec((None, tr, H * O), lambda b, t: (b, t, 0)),
        ),
        compiler_params=pltpu.CompilerParams(
            dimension_semantics=("parallel", "parallel"),
            vmem_limit_bytes=budget),
        cost_estimate=pl.CostEstimate(flops=flops1, transcendentals=B * N,
                                      bytes_accessed=bytes1),
    )(feats, g2, bt2, w_a, b_a, w_b, b_b, w2y)

    # XLA glue: r[b, x, j*O + o] = s2[b, j, x*O + o]   (small H<->N swap done
    # outside the kernel; touches only N*H*O elements, << the N*N*O output).
    r = s2.reshape(B, N, H, O).transpose(0, 2, 1, 3).reshape(B, H, N * O)

    # ---- Kernel 2: j-tiled lane-dense matmul, r resident over inner i loop --
    ti, tn = _stage2_tiles(N, H, O, st_sz, out_sz, budget)
    nj = (N * O) // tn
    ni = N // ti
    flops2 = 2 * B * N * N * O * H
    bytes2 = (B * nj * N * H * st_sz + B * H * N * O * st_sz
              + B * N * O * 4 + B * N * N * O * out_sz)
    out_flat = pl.pallas_call(
        _stage2_kernel,
        out_shape=jax.ShapeDtypeStruct((B, N, N * O), out_dtype),
        grid=(B, nj, ni),   # i innermost -> (H, tn) r tile stays VMEM-resident
        in_specs=[
            pl.BlockSpec((None, ti, H), lambda b, j, i: (b, i, 0)),    # a
            pl.BlockSpec((None, H, tn), lambda b, j, i: (b, 0, j)),    # r
            pl.BlockSpec((1, tn), lambda b, j, i: (0, j)),             # bias slice
        ],
        out_specs=pl.BlockSpec((None, ti, tn), lambda b, j, i: (b, i, j)),
        compiler_params=pltpu.CompilerParams(
            dimension_semantics=("parallel", "parallel", "arbitrary"),
            vmem_limit_bytes=budget),
        cost_estimate=pl.CostEstimate(flops=flops2, transcendentals=0,
                                      bytes_accessed=bytes2),
    )(a_act, r, bias_tiled)

    # Free view: (B, N, N*O) -> (B, i, j, O)
    return out_flat.reshape(B, N, N, O)


# --------------------------------------------------------------------------
# Reference, init, test
# --------------------------------------------------------------------------
def init_params(key, dim_in, dim_out, dim_hidden):
    """Deterministic, PyTorch-default-style init (uniform +-1/sqrt(fan_in))."""
    k1, k2, k3, k4 = jax.random.split(key, 4)
    lim_in = 1.0 / (dim_in ** 0.5)
    lim_out = 1.0 / (dim_hidden ** 2) ** 0.5
    return {
        "ln_gamma": jnp.ones((dim_in,), jnp.float32),
        "ln_beta": jnp.zeros((dim_in,), jnp.float32),
        "w_in": jax.random.uniform(k1, (2 * dim_hidden, dim_in), jnp.float32,
                                   -lim_in, lim_in),
        "b_in": jax.random.uniform(k2, (2 * dim_hidden,), jnp.float32,
                                   -lim_in, lim_in),
        "w_out": jax.random.uniform(k3, (dim_out, dim_hidden ** 2), jnp.float32,
                                    -lim_out, lim_out),
        "b_out": jax.random.uniform(k4, (dim_out,), jnp.float32,
                                    -lim_out, lim_out),
    }


def reference_forward(feats, params):
    """Pure-JAX reference mirroring the PyTorch module exactly."""
    x = feats.astype(jnp.float32)
    mean = x.mean(-1, keepdims=True)
    var = ((x - mean) ** 2).mean(-1, keepdims=True)
    xn = (x - mean) / jnp.sqrt(var + LN_EPS)
    xn = xn * params["ln_gamma"] + params["ln_beta"]
    proj = xn @ params["w_in"].T + params["b_in"]
    H = params["w_in"].shape[0] // 2
    a, b = proj[..., :H], proj[..., H:]
    mul = jnp.einsum('bix,bjy->bijxy', a, b)
    B, N = a.shape[:2]
    mul = mul.reshape(B, N, N, H * H)
    return mul @ params["w_out"].T + params["b_out"]


if __name__ == "__main__":
    B, N = 2, 8
    dim_in, dim_hidden, dim_out = 32, 16, 32

    key = jax.random.PRNGKey(0)
    kp, kx = jax.random.split(key)
    params = init_params(kp, dim_in, dim_out, dim_hidden)
    feats = jax.random.normal(kx, (B, N, dim_in), dtype=jnp.float32)

    ref = reference_forward(feats, params)

    # f32 path (bit-faithful to the PyTorch module; tight tolerance).
    out = jax.jit(learned_outer_forward)(feats, params)
    out = jax.block_until_ready(out)
    assert out.shape == (B, N, N, dim_out), out.shape
    err = float(jnp.abs(out - ref).max())
    assert jnp.allclose(out, ref, atol=1e-3, rtol=1e-3), err

    # bf16 path (bf16 MXU operands + intermediates + output; f32 accumulation).
    out16 = jax.jit(lambda f, p: learned_outer_forward(f, p, use_bf16=True))(
        feats, params)
    out16 = jax.block_until_ready(out16)
    assert out16.shape == (B, N, N, dim_out), out16.shape
    assert out16.dtype == jnp.bfloat16, out16.dtype
    err16 = float(jnp.abs(out16.astype(jnp.float32) - ref).max())
    assert jnp.allclose(out16.astype(jnp.float32), ref,
                        atol=5e-2, rtol=5e-2), err16

    print("KERNEL_OK")
</pallas_src>

<mosaic_0001>
module attributes {stable_mosaic.version = 11 : i64} {
  func.func @_ln_proj_stage1_kernel(%arg0: i32, %arg1: i32, %arg2: memref<1x8x32xf32, #tpu.memory_space<vmem>>, %arg3: memref<1x32xf32, #tpu.memory_space<vmem>>, %arg4: memref<1x32xf32, #tpu.memory_space<vmem>>, %arg5: memref<32x16xf32, #tpu.memory_space<vmem>>, %arg6: memref<1x16xf32, #tpu.memory_space<vmem>>, %arg7: memref<32x16xf32, #tpu.memory_space<vmem>>, %arg8: memref<1x16xf32, #tpu.memory_space<vmem>>, %arg9: memref<16x512xf32, #tpu.memory_space<vmem>>, %arg10: memref<1x8x16xf32, #tpu.memory_space<vmem>>, %arg11: memref<1x8x512xf32, #tpu.memory_space<vmem>>) attributes {dimension_semantics = [#tpu.dimension_semantics<parallel>, #tpu.dimension_semantics<parallel>], iteration_bounds = array<i64: 2, 1>, scalar_prefetch = 0 : i64, scratch_operands = 0 : i64, tpu.core_type = #tpu.core_type<tc>, window_params = [{transform_indices = @transform_0, window_bounds = array<i64: 1, 8, 32>}, {pipeline_mode = #tpu.pipeline_mode<synchronous>, transform_indices = @transform_1, window_bounds = array<i64: 1, 32>}, {pipeline_mode = #tpu.pipeline_mode<synchronous>, transform_indices = @transform_2, window_bounds = array<i64: 1, 32>}, {pipeline_mode = #tpu.pipeline_mode<synchronous>, transform_indices = @transform_3, window_bounds = array<i64: 32, 16>}, {pipeline_mode = #tpu.pipeline_mode<synchronous>, transform_indices = @transform_4, window_bounds = array<i64: 1, 16>}, {pipeline_mode = #tpu.pipeline_mode<synchronous>, transform_indices = @transform_5, window_bounds = array<i64: 32, 16>}, {pipeline_mode = #tpu.pipeline_mode<synchronous>, transform_indices = @transform_6, window_bounds = array<i64: 1, 16>}, {pipeline_mode = #tpu.pipeline_mode<synchronous>, transform_indices = @transform_7, window_bounds = array<i64: 16, 512>}, {transform_indices = @transform_8, window_bounds = array<i64: 1, 8, 16>}, {transform_indices = @transform_9, window_bounds = array<i64: 1, 8, 512>}]} {
    %c0 = arith.constant 0 : index
    %c0_0 = arith.constant 0 : index
    %c0_1 = arith.constant 0 : index
    %0 = vector.load %arg2[%c0, %c0_0, %c0_1] : memref<1x8x32xf32, #tpu.memory_space<vmem>>, vector<1x8x32xf32>
    %1 = vector.shape_cast %0 : vector<1x8x32xf32> to vector<8x32xf32>
    %cst = arith.constant dense<0.000000e+00> : vector<8xf32>
    %2 = vector.multi_reduction <add>, %1, %cst [1] : vector<8x32xf32> to vector<8xf32>
    %3 = vector.shape_cast %2 : vector<8xf32> to vector<8x1xf32>
    %cst_2 = arith.constant 3.200000e+01 : f32
    %4 = vector.broadcast %cst_2 : f32 to vector<8x1xf32>
    %5 = arith.divf %3, %4 : vector<8x1xf32>
    %6 = vector.broadcast %5 : vector<8x1xf32> to vector<8x32xf32>
    %7 = arith.subf %1, %6 : vector<8x32xf32>
    %8 = arith.mulf %7, %7 : vector<8x32xf32>
    %cst_3 = arith.constant dense<0.000000e+00> : vector<8xf32>
    %9 = vector.multi_reduction <add>, %8, %cst_3 [1] : vector<8x32xf32> to vector<8xf32>
    %10 = vector.shape_cast %9 : vector<8xf32> to vector<8x1xf32>
    %cst_4 = arith.constant 3.200000e+01 : f32
    %11 = vector.broadcast %cst_4 : f32 to vector<8x1xf32>
    %12 = arith.divf %10, %11 : vector<8x1xf32>
    %cst_5 = arith.constant 9.99999974E-6 : f32
    %13 = vector.broadcast %cst_5 : f32 to vector<8x1xf32>
    %14 = arith.addf %12, %13 : vector<8x1xf32>
    %15 = math.rsqrt %14 : vector<8x1xf32>
    %16 = vector.broadcast %15 : vector<8x1xf32> to vector<8x32xf32>
    %17 = arith.mulf %7, %16 : vector<8x32xf32>
    %c0_6 = arith.constant 0 : index
    %c0_7 = arith.constant 0 : index
    %18 = vector.load %arg3[%c0_6, %c0_7] : memref<1x32xf32, #tpu.memory_space<vmem>>, vector<1x32xf32>
    %19 = vector.broadcast %18 : vector<1x32xf32> to vector<8x32xf32>
    %20 = arith.mulf %17, %19 : vector<8x32xf32>
    %c0_8 = arith.constant 0 : index
    %c0_9 = arith.constant 0 : index
    %21 = vector.load %arg4[%c0_8, %c0_9] : memref<1x32xf32, #tpu.memory_space<vmem>>, vector<1x32xf32>
    %22 = vector.broadcast %21 : vector<1x32xf32> to vector<8x32xf32>
    %23 = arith.addf %20, %22 : vector<8x32xf32>
    %c0_10 = arith.constant 0 : index
    %c0_11 = arith.constant 0 : index
    %24 = vector.load %arg5[%c0_10, %c0_11] : memref<32x16xf32, #tpu.memory_space<vmem>>, vector<32x16xf32>
    %cst_12 = arith.constant dense<0.000000e+00> : vector<8x16xf32>
    %25 = tpu.matmul %23, %24, %cst_12 {dimension_numbers = #tpu.dot_dimension_numbers<[1], [0], [0], [1], [0, 0, 1, 1], [], []>} : vector<8x32xf32>, vector<32x16xf32>, vector<8x16xf32> -> vector<8x16xf32>
    %c0_13 = arith.constant 0 : index
    %c0_14 = arith.constant 0 : index
    %26 = vector.load %arg6[%c0_13, %c0_14] : memref<1x16xf32, #tpu.memory_space<vmem>>, vector<1x16xf32>
    %27 = vector.broadcast %26 : vector<1x16xf32> to vector<8x16xf32>
    %28 = arith.addf %25, %27 : vector<8x16xf32>
    %c0_15 = arith.constant 0 : index
    %c0_16 = arith.constant 0 : index
    %c0_17 = arith.constant 0 : index
    %29 = vector.load %arg10[%c0_15, %c0_16, %c0_17] : memref<1x8x16xf32, #tpu.memory_space<vmem>>, vector<1x8x16xf32>
    %30 = vector.shape_cast %29 : vector<1x8x16xf32> to vector<8x16xf32>
    %31 = vector.shape_cast %28 : vector<8x16xf32> to vector<1x8x16xf32>
    tpu.vector_store %arg10[%c0_15, %c0_16, %c0_17], %31 {strides = array<i32>} : memref<1x8x16xf32, #tpu.memory_space<vmem>>, vector<1x8x16xf32>,
    %c0_18 = arith.constant 0 : index
    %c0_19 = arith.constant 0 : index
    %32 = vector.load %arg7[%c0_18, %c0_19] : memref<32x16xf32, #tpu.memory_space<vmem>>, vector<32x16xf32>
    %cst_20 = arith.constant dense<0.000000e+00> : vector<8x16xf32>
    %33 = tpu.matmul %23, %32, %cst_20 {dimension_numbers = #tpu.dot_dimension_numbers<[1], [0], [0], [1], [0, 0, 1, 1], [], []>} : vector<8x32xf32>, vector<32x16xf32>, vector<8x16xf32> -> vector<8x16xf32>
    %c0_21 = arith.constant 0 : index
    %c0_22 = arith.constant 0 : index
    %34 = vector.load %arg8[%c0_21, %c0_22] : memref<1x16xf32, #tpu.memory_space<vmem>>, vector<1x16xf32>
    %35 = vector.broadcast %34 : vector<1x16xf32> to vector<8x16xf32>
    %36 = arith.addf %33, %35 : vector<8x16xf32>
    %c0_23 = arith.constant 0 : index
    %c0_24 = arith.constant 0 : index
    %37 = vector.load %arg9[%c0_23, %c0_24] : memref<16x512xf32, #tpu.memory_space<vmem>>, vector<16x512xf32>
    %cst_25 = arith.constant dense<0.000000e+00> : vector<8x512xf32>
    %38 = tpu.matmul %36, %37, %cst_25 {dimension_numbers = #tpu.dot_dimension_numbers<[1], [0], [0], [1], [0, 0, 1, 1], [], []>} : vector<8x16xf32>, vector<16x512xf32>, vector<8x512xf32> -> vector<8x512xf32>
    %c0_26 = arith.constant 0 : index
    %c0_27 = arith.constant 0 : index
    %c0_28 = arith.constant 0 : index
    %39 = vector.load %arg11[%c0_26, %c0_27, %c0_28] : memref<1x8x512xf32, #tpu.memory_space<vmem>>, vector<1x8x512xf32>
    %40 = vector.shape_cast %39 : vector<1x8x512xf32> to vector<8x512xf32>
    %41 = vector.shape_cast %38 : vector<8x512xf32> to vector<1x8x512xf32>
    tpu.vector_store %arg11[%c0_26, %c0_27, %c0_28], %41 {strides = array<i32>} : memref<1x8x512xf32, #tpu.memory_space<vmem>>, vector<1x8x512xf32>,
    return
  }
  func.func @transform_0(%arg0: i32, %arg1: i32) -> (i32, i32, i32) {
    %c0_i32 = arith.constant 0 : i32
    %c0_i32_0 = arith.constant 0 : i32
    return %arg0, %arg1, %c0_i32 : i32, i32, i32
  }
  func.func @transform_1(%arg0: i32, %arg1: i32) -> (i32, i32) {
    %c0_i32 = arith.constant 0 : i32
    %c0_i32_0 = arith.constant 0 : i32
    %c0_i32_1 = arith.constant 0 : i32
    return %c0_i32, %c0_i32_0 : i32, i32
  }
  func.func @transform_2(%arg0: i32, %arg1: i32) -> (i32, i32) {
    %c0_i32 = arith.constant 0 : i32
    %c0_i32_0 = arith.constant 0 : i32
    %c0_i32_1 = arith.constant 0 : i32
    return %c0_i32, %c0_i32_0 : i32, i32
  }
  func.func @transform_3(%arg0: i32, %arg1: i32) -> (i32, i32) {
    %c0_i32 = arith.constant 0 : i32
    %c0_i32_0 = arith.constant 0 : i32
    %c0_i32_1 = arith.constant 0 : i32
    return %c0_i32, %c0_i32_0 : i32, i32
  }
  func.func @transform_4(%arg0: i32, %arg1: i32) -> (i32, i32) {
    %c0_i32 = arith.constant 0 : i32
    %c0_i32_0 = arith.constant 0 : i32
    %c0_i32_1 = arith.constant 0 : i32
    return %c0_i32, %c0_i32_0 : i32, i32
  }
  func.func @transform_5(%arg0: i32, %arg1: i32) -> (i32, i32) {
    %c0_i32 = arith.constant 0 : i32
    %c0_i32_0 = arith.constant 0 : i32
    %c0_i32_1 = arith.constant 0 : i32
    return %c0_i32, %c0_i32_0 : i32, i32
  }
  func.func @transform_6(%arg0: i32, %arg1: i32) -> (i32, i32) {
    %c0_i32 = arith.constant 0 : i32
    %c0_i32_0 = arith.constant 0 : i32
    %c0_i32_1 = arith.constant 0 : i32
    return %c0_i32, %c0_i32_0 : i32, i32
  }
  func.func @transform_7(%arg0: i32, %arg1: i32) -> (i32, i32) {
    %c0_i32 = arith.constant 0 : i32
    %c0_i32_0 = arith.constant 0 : i32
    %c0_i32_1 = arith.constant 0 : i32
    return %c0_i32, %c0_i32_0 : i32, i32
  }
  func.func @transform_8(%arg0: i32, %arg1: i32) -> (i32, i32, i32) {
    %c0_i32 = arith.constant 0 : i32
    %c0_i32_0 = arith.constant 0 : i32
    return %arg0, %arg1, %c0_i32 : i32, i32, i32
  }
  func.func @transform_9(%arg0: i32, %arg1: i32) -> (i32, i32, i32) {
    %c0_i32 = arith.constant 0 : i32
    %c0_i32_0 = arith.constant 0 : i32
    return %arg0, %arg1, %c0_i32 : i32, i32, i32
  }
}

module attributes {stable_mosaic.version = 11 : i64} {
  func.func @_stage2_kernel(%arg0: i32, %arg1: i32, %arg2: i32, %arg3: memref<1x8x16xf32, #tpu.memory_space<vmem>>, %arg4: memref<1x16x256xf32, #tpu.memory_space<vmem>>, %arg5: memref<1x256xf32, #tpu.memory_space<vmem>>, %arg6: memref<1x8x256xf32, #tpu.memory_space<vmem>>) attributes {dimension_semantics = [#tpu.dimension_semantics<parallel>, #tpu.dimension_semantics<parallel>, #tpu.dimension_semantics<arbitrary>], iteration_bounds = array<i64: 2, 1, 1>, scalar_prefetch = 0 : i64, scratch_operands = 0 : i64, tpu.core_type = #tpu.core_type<tc>, window_params = [{transform_indices = @transform_0, window_bounds = array<i64: 1, 8, 16>}, {transform_indices = @transform_1, window_bounds = array<i64: 1, 16, 256>}, {transform_indices = @transform_2, window_bounds = array<i64: 1, 256>}, {transform_indices = @transform_3, window_bounds = array<i64: 1, 8, 256>}]} {
    %c0 = arith.constant 0 : index
    %c0_0 = arith.constant 0 : index
    %c0_1 = arith.constant 0 : index
    %0 = vector.load %arg3[%c0, %c0_0, %c0_1] : memref<1x8x16xf32, #tpu.memory_space<vmem>>, vector<1x8x16xf32>
    %1 = vector.shape_cast %0 : vector<1x8x16xf32> to vector<8x16xf32>
    %c0_2 = arith.constant 0 : index
    %c0_3 = arith.constant 0 : index
    %c0_4 = arith.constant 0 : index
    %2 = vector.load %arg4[%c0_2, %c0_3, %c0_4] : memref<1x16x256xf32, #tpu.memory_space<vmem>>, vector<1x16x256xf32>
    %3 = vector.shape_cast %2 : vector<1x16x256xf32> to vector<16x256xf32>
    %cst = arith.constant dense<0.000000e+00> : vector<8x256xf32>
    %4 = tpu.matmul %1, %3, %cst {dimension_numbers = #tpu.dot_dimension_numbers<[1], [0], [0], [1], [0, 0, 1, 1], [], []>} : vector<8x16xf32>, vector<16x256xf32>, vector<8x256xf32> -> vector<8x256xf32>
    %c0_5 = arith.constant 0 : index
    %c0_6 = arith.constant 0 : index
    %5 = vector.load %arg5[%c0_5, %c0_6] : memref<1x256xf32, #tpu.memory_space<vmem>>, vector<1x256xf32>
    %6 = vector.broadcast %5 : vector<1x256xf32> to vector<8x256xf32>
    %7 = arith.addf %4, %6 : vector<8x256xf32>
    %c0_7 = arith.constant 0 : index
    %c0_8 = arith.constant 0 : index
    %c0_9 = arith.constant 0 : index
    %8 = vector.load %arg6[%c0_7, %c0_8, %c0_9] : memref<1x8x256xf32, #tpu.memory_space<vmem>>, vector<1x8x256xf32>
    %9 = vector.shape_cast %8 : vector<1x8x256xf32> to vector<8x256xf32>
    %10 = vector.shape_cast %7 : vector<8x256xf32> to vector<1x8x256xf32>
    tpu.vector_store %arg6[%c0_7, %c0_8, %c0_9], %10 {strides = array<i32>} : memref<1x8x256xf32, #tpu.memory_space<vmem>>, vector<1x8x256xf32>,
    return
  }
  func.func @transform_0(%arg0: i32, %arg1: i32, %arg2: i32) -> (i32, i32, i32) {
    %c0_i32 = arith.constant 0 : i32
    %c0_i32_0 = arith.constant 0 : i32
    return %arg0, %arg2, %c0_i32 : i32, i32, i32
  }
  func.func @transform_1(%arg0: i32, %arg1: i32, %arg2: i32) -> (i32, i32, i32) {
    %c0_i32 = arith.constant 0 : i32
    %c0_i32_0 = arith.constant 0 : i32
    return %arg0, %c0_i32, %arg1 : i32, i32, i32
  }
  func.func @transform_2(%arg0: i32, %arg1: i32, %arg2: i32) -> (i32, i32) {
    %c0_i32 = arith.constant 0 : i32
    %c0_i32_0 = arith.constant 0 : i32
    return %c0_i32, %arg1 : i32, i32
  }
  func.func @transform_3(%arg0: i32, %arg1: i32, %arg2: i32) -> (i32, i32, i32) {
    %c0_i32 = arith.constant 0 : i32
    return %arg0, %arg2, %arg1 : i32, i32, i32
  }
}

</mosaic_0001>

<llo_original>
// kernel: tile.8
$region0: #{tile.8}
  #allocation0 [shape = 's32[1]{0}', space=sflag, size = 0x4, scoped, tag = 'scoped memory for tile.8']
  %s0 = inlined_call_operand.vmem [shape: f32[32], index: 0, kind: input, shape index: {}]
  %s1 = inlined_call_operand.vmem [shape: f32[8,32], index: 1, kind: output, shape index: {}]
  // Predicated region
  $region2: #{tile.8} parent=0 // pred_check
    _
  $region3: #{tile.8} parent=0 // pred_check_branch
    %3 = sbr.rel (0) target = $region5
  $region4: #{tile.8} parent=0 // pred_region
    _
  $region5: #{tile.8} parent=0 // pred_fallthru
    _
  %v4 = vld [vmem:[%s0] ss:$0 sm:$0xff]
  %5 = vst [vmem:[%s1] sm:$0xff] %v4

// kernel: tile.9
$region0: #{tile.9}
  %s0 = inlined_call_operand.vmem [shape: f32[8,32], index: 0, kind: input, shape index: {}]
  %s1 = inlined_call_operand.vmem [shape: f32[1,256], index: 1, kind: output, shape index: {}]
  $region1: #{tile.9} parent=0
    #allocation0 [shape = 'u8[8192]{0}', space=vmem, size = 0x2000, scoped, tag = 'scoped mem for output reshape']
    %s2 = smov 3
    %v3 = vld [vmem:[%s0] ss:$4 sm:%s2]
    %vm4 = vcmask 261120
    %5 = vst.msk [vmem:[#allocation0] ss:$8 sm:$0x3] %vm4, %v3
    %s6 = scalar_lea.vmem %s0, 3
    %s7 = smov 3
    %v8 = vld [vmem:[%s6] ss:$4 sm:%s7]
    %9 = vrot.lane.b32.xlu0 %v8, 96
    %v10 = vpop.permute.xlu0 %9
    %vm11 = vcmask 1048320
    %12 = vst.msk [vmem:[#allocation0] ss:$8 sm:$0x3] %vm11, %v10
    %s13 = scalar_lea.vmem %s0, 2
    %s14 = smov 3
    %v15 = vld [vmem:[%s13] ss:$4 sm:%s14]
    %16 = vrot.lane.b32.xlu0 %v15, 64
    %v17 = vpop.permute.xlu0 %16
    %vm18 = vcmask 785920
    %19 = vst.msk [vmem:[#allocation0] ss:$8 sm:$0x3] %vm18, %v17
    %s20 = scalar_lea.vmem %s0, 1
    %s21 = smov 3
    %v22 = vld [vmem:[%s20] ss:$4 sm:%s21]
    %23 = vrot.lane.b32.xlu0 %v22, 32
    %v24 = vpop.permute.xlu0 %23
    %vm25 = vcmask 523520
    %26 = vst.msk [vmem:[#allocation0] ss:$8 sm:$0x3] %vm25, %v24
    %s28 = ssub.s32 2, 1
    %v29 = vld [vmem:[#allocation0] sm:%s28]
    %s31 = ssub.s32 2, 1
    %32 = vst [vmem:[%s1] sm:%s31] %v29
    %s33 = scalar_lea.vmem [#allocation0], 8
    %v34 = vld [vmem:[%s33] sm:%s28]
    %s36 = ssub.s32 2, 1
    %s37 = scalar_lea.vmem %s1, 1
    %38 = vst [vmem:[%s37] sm:%s36] %v34

// kernel: learned_outer_forward.3
$region0: #{learned_outer_forward.3}
  #allocation0 [shape = 'u32[]', space=smem, size = 0x4, offset = 0x4, fixed_abs, tag = 'smem constant byte address 0x4 - core index']
  #allocation1 [shape = 'u32[72,128]{1,0:T(1,128)}', space=vmem, size = 0x9000, scoped, tag = 'internal scratch']
  %s0 = inlined_call_operand.vmem [shape: f32[2,8,16], index: 0, kind: input, shape index: {}]
  %s1 = inlined_call_operand.vmem [shape: f32[2,16,256], index: 1, kind: input, shape index: {}]
  %s2 = inlined_call_operand.vmem [shape: f32[1,256], index: 2, kind: input, shape index: {}]
  %s3 = inlined_call_operand.vmem [shape: f32[2,8,256], index: 3, kind: output, shape index: {}]
  %s4 = sld [smem:[#allocation0]]
  $region45: #{learned_outer_forward.3} parent=0
    _
  %s6 = ssub.s32 1, %s4
  %s7 = scalar_select 0, %s6, %s4
  loop: start=0, step=1, limit=4
  $region2: #{learned_outer_forward.3} parent=0 // loop_pre_header
    _
  $region3: #{learned_outer_forward.3} parent=0 // loop_header
    %s9 = sphi 0, %s13
    %p10 = scmp.ge.s32.totalorder %s9, 4
    %s16 = sphi 0, %s35
    %s17 = sphi 0, %s31
    %s18 = sphi 0, %s27
    %s19 = sphi 0, %s16
    %s20 = sphi 0, %s17
    %s21 = sphi 0, %s18
    %s22 = sphi 0, %s19
    %s23 = sphi 0, %s20
    %s24 = sphi 0, %s21
    %s40 = sphi 0, %s42
    %s43 = sphi 0, %s40
    %s44 = sphi 0, %s43
    %s60 = sphi 0, %s44
    %s68 = sphi 0, %s70
    %s71 = sphi 0, %s68
    %s72 = sphi 0, %s71
    %s88 = sphi 0, %s72
    %s94 = sphi 0, %s96
    %s97 = sphi 0, %s94
    %s98 = sphi 0, %s97
    %s114 = sphi 0, %s98
    %s124 = sphi 0, %s126
    %s127 = sphi 0, %s124
    %s128 = sphi 0, %s127
    %s144 = sphi 0, %s128
  $region4: #{learned_outer_forward.3} parent=0 // loop_header_branch
    %12 = sbr.rel (%p10) target = $region8
  $region5: #{learned_outer_forward.3} parent=0 // loop_body
    %s14 = ssub.s32 %s9, 1
    %s15 = ssub.s32 %s9, 2
    %s25 = sadd.s32 1, %s18
    %p26 = scmp.ge.s32.totalorder %s25, 1
    %s27 = scalar_select %p26, 0, %s25
    %s28 = sadd.s32 1, %s17
    %s29 = scalar_select %p26, %s28, %s17
    %p30 = scmp.ge.s32.totalorder %s29, 1
    %s31 = scalar_select %p30, 0, %s29
    %s32 = sadd.s32 1, %s16
    %s33 = scalar_select %p30, %s32, %s16
    %p34 = scmp.ge.s32.totalorder %s33, 2
    %s35 = scalar_select %p34, 0, %s33
    %s36 = ssub.s32 %s16, %s35
    %s37 = ssub.s32 %s18, %s27
    %s38 = sor.u32 %s36, %s37
    %p39 = scmp.eq.s32.totalorder %s38, 0
    %s41 = sadd.s32 %s40, 1
    %s42 = scalar_select %p39, %s40, %s41
    %p45 = pneg %p39
    %p46 = scmp.eq.s32.totalorder %s9, 1
    %p47 = por %p45, %p46
    %p48 = scmp.ne.s32.totalorder %s40, %s43
    %p49 = scmp.eq.s32.totalorder %s9, 0
    %p50 = por %p48, %p49
    %p51 = scmp.ne.s32.totalorder %s40, %s43
    %p52 = scmp.eq.s32.totalorder %s14, 1
    %p53 = por %p51, %p52
    %p54 = scmp.ne.s32.totalorder %s43, %s44
    %p55 = scmp.eq.s32.totalorder %s14, 0
    %p56 = por %p54, %p55
    %p57 = scmp.ne.s32.totalorder %s43, %s44
    %p58 = scmp.eq.s32.totalorder %s15, 1
    %p59 = por %p57, %p58
    %p61 = scmp.ne.s32.totalorder %s44, %s60
    %p62 = scmp.eq.s32.totalorder %s15, 0
    %p63 = por %p61, %p62
    %s64 = ssub.s32 %s16, %s35
    %s65 = ssub.s32 %s17, %s31
    %s66 = sor.u32 %s64, %s65
    %p67 = scmp.eq.s32.totalorder %s66, 0
    %s69 = sadd.s32 %s68, 1
    %s70 = scalar_select %p67, %s68, %s69
    %p73 = pneg %p67
    %p74 = scmp.eq.s32.totalorder %s9, 1
    %p75 = por %p73, %p74
    %p76 = scmp.ne.s32.totalorder %s68, %s71
    %p77 = scmp.eq.s32.totalorder %s9, 0
    %p78 = por %p76, %p77
    %p79 = scmp.ne.s32.totalorder %s68, %s71
    %p80 = scmp.eq.s32.totalorder %s14, 1
    %p81 = por %p79, %p80
    %p82 = scmp.ne.s32.totalorder %s71, %s72
    %p83 = scmp.eq.s32.totalorder %s14, 0
    %p84 = por %p82, %p83
    %p85 = scmp.ne.s32.totalorder %s71, %s72
    %p86 = scmp.eq.s32.totalorder %s15, 1
    %p87 = por %p85, %p86
    %p89 = scmp.ne.s32.totalorder %s72, %s88
    %p90 = scmp.eq.s32.totalorder %s15, 0
    %p91 = por %p89, %p90
    %s92 = ssub.s32 %s17, %s31
    %p93 = scmp.eq.s32.totalorder %s92, 0
    %s95 = sadd.s32 %s94, 1
    %s96 = scalar_select %p93, %s94, %s95
    %p99 = pneg %p93
    %p100 = scmp.eq.s32.totalorder %s9, 1
    %p101 = por %p99, %p100
    %p102 = scmp.ne.s32.totalorder %s94, %s97
    %p103 = scmp.eq.s32.totalorder %s9, 0
    %p104 = por %p102, %p103
    %p105 = scmp.ne.s32.totalorder %s94, %s97
    %p106 = scmp.eq.s32.totalorder %s14, 1
    %p107 = por %p105, %p106
    %p108 = scmp.ne.s32.totalorder %s97, %s98
    %p109 = scmp.eq.s32.totalorder %s14, 0
    %p110 = por %p108, %p109
    %p111 = scmp.ne.s32.totalorder %s97, %s98
    %p112 = scmp.eq.s32.totalorder %s15, 1
    %p113 = por %p111, %p112
    %p115 = scmp.ne.s32.totalorder %s98, %s114
    %p116 = scmp.eq.s32.totalorder %s15, 0
    %p117 = por %p115, %p116
    %s118 = ssub.s32 %s16, %s35
    %s119 = ssub.s32 %s18, %s27
    %s120 = sor.u32 %s118, %s119
    %s121 = ssub.s32 %s17, %s31
    %s122 = sor.u32 %s120, %s121
    %p123 = scmp.eq.s32.totalorder %s122, 0
    %s125 = sadd.s32 %s124, 1
    %s126 = scalar_select %p123, %s124, %s125
    %p129 = pneg %p123
    %p130 = scmp.eq.s32.totalorder %s9, 1
    %p131 = por %p129, %p130
    %p132 = scmp.ne.s32.totalorder %s124, %s127
    %p133 = scmp.eq.s32.totalorder %s9, 0
    %p134 = por %p132, %p133
    %p135 = scmp.ne.s32.totalorder %s124, %s127
    %p136 = scmp.eq.s32.totalorder %s14, 1
    %p137 = por %p135, %p136
    %p138 = scmp.ne.s32.totalorder %s127, %s128
    %p139 = scmp.eq.s32.totalorder %s14, 0
    %p140 = por %p138, %p139
    %p141 = scmp.ne.s32.totalorder %s127, %s128
    %p142 = scmp.eq.s32.totalorder %s15, 1
    %p143 = por %p141, %p142
    %p145 = scmp.ne.s32.totalorder %s128, %s144
    %p146 = scmp.eq.s32.totalorder %s15, 0
    %p147 = por %p145, %p146
    %p148 = scmp.le.s32.totalorder 1, %s9
    %p149 = scmp.lt.s32.totalorder %s9, 3
    %p150 = pnand %p148, %p149
    %p151 = pneg %p150
    // Predicated region
    $region9: #{learned_outer_forward.3} parent=5 // pred_check
      _
    $region10: #{learned_outer_forward.3} parent=5 // pred_check_branch
      %153 = sbr.rel (%p150) target = $region12
    $region11: #{learned_outer_forward.3} parent=5 // pred_region
      %s154 = ssub.s32 %s9, 1
      // Predicated region
      $region13: #{learned_outer_forward.3} parent=11 // pred_check
        %p155 = pneg %p110
      $region14: #{learned_outer_forward.3} parent=11 // pred_check_branch
        %157 = sbr.rel (%p155) target = $region16
      $region15: #{learned_outer_forward.3} parent=11 // pred_region
        %s158 = smul.u32 2, %s20
        %p159 = scmp.lt.s32.totalorder %s158, 1
        %s160 = scalar_select %p159, %s158, 1
        %s161 = scalar_lea.vmem %s2, %s160
        %s162 = smul.u32 2, %s20
      $region16: #{learned_outer_forward.3} parent=11 // pred_fallthru
        _
    $region12: #{learned_outer_forward.3} parent=5 // pred_fallthru
      _
    %p163 = scmp.lt.s32.totalorder %s9, 2
    // Predicated region
    $region17: #{learned_outer_forward.3} parent=5 // pred_check
      %p164 = pneg %p163
    $region18: #{learned_outer_forward.3} parent=5 // pred_check_branch
      %166 = sbr.rel (%p164) target = $region20
    $region19: #{learned_outer_forward.3} parent=5 // pred_region
      // Predicated region
      $region21: #{learned_outer_forward.3} parent=19 // pred_check
        %p167 = pneg %p50
      $region22: #{learned_outer_forward.3} parent=19 // pred_check_branch
        %169 = sbr.rel (%p167) target = $region24
      $region23: #{learned_outer_forward.3} parent=19 // pred_region
        %p170 = scmp.lt.s32.totalorder %s16, 1
        %s171 = scalar_select %p170, %s16, 1
        %p172 = scmp.lt.s32.totalorder %s18, 0
        %s173 = scalar_select %p172, %s18, 0
        %s174 = sadd.s32 %s173, %s171
        %s175 = smul.addr %s174, 8
        %s176 = scalar_lea.vmem %s0, %s175
      $region24: #{learned_outer_forward.3} parent=19 // pred_fallthru
        _
      // Predicated region
      $region25: #{learned_outer_forward.3} parent=19 // pred_check
        %p177 = pneg %p78
      $region26: #{learned_outer_forward.3} parent=19 // pred_check_branch
        %179 = sbr.rel (%p177) target = $region28
      $region27: #{learned_outer_forward.3} parent=19 // pred_region
        %s180 = smul.u32 2, %s17
        %p181 = scmp.lt.s32.totalorder %s16, 1
        %s182 = scalar_select %p181, %s16, 1
        %p183 = scmp.lt.s32.totalorder %s180, 1
        %s184 = scalar_select %p183, %s180, 1
        %s185 = smul.addr %s182, 4
        %s186 = sadd.s32 %s184, %s185
        %s187 = smul.addr %s186, 8
        %s188 = scalar_lea.vmem %s1, %s187
        %s189 = smul.u32 2, %s17
      $region28: #{learned_outer_forward.3} parent=19 // pred_fallthru
        _
    $region20: #{learned_outer_forward.3} parent=5 // pred_fallthru
      _
    %p190 = scmp.le.s32.totalorder 1, %s9
    %p191 = scmp.lt.s32.totalorder %s9, 3
    %p192 = pnand %p190, %p191
    %p193 = pneg %p192
    // Predicated region
    $region29: #{learned_outer_forward.3} parent=5 // pred_check
      _
    $region30: #{learned_outer_forward.3} parent=5 // pred_check_branch
      %195 = sbr.rel (%p192) target = $region32
    $region31: #{learned_outer_forward.3} parent=5 // pred_region
      %s196 = ssub.s32 %s9, 1
      %p197 = scmp.lt.s32.totalorder %s19, 1
      %s198 = scalar_select %p197, %s19, 1
      %p199 = scmp.lt.s32.totalorder %s21, 0
      %s200 = scalar_select %p199, %s21, 0
      %s201 = sadd.s32 %s200, %s198
      %s202 = smul.addr %s201, 8
      %s203 = scalar_lea.vmem %s0, %s202
      %p204 = pneg %p56
      %p205 = pneg %p53
      %s206 = smul.u32 2, %s20
      %p207 = scmp.lt.s32.totalorder %s19, 1
      %s208 = scalar_select %p207, %s19, 1
      %p209 = scmp.lt.s32.totalorder %s206, 1
      %s210 = scalar_select %p209, %s206, 1
      %s211 = smul.addr %s208, 4
      %s212 = sadd.s32 %s210, %s211
      %s213 = smul.addr %s212, 8
      %s214 = scalar_lea.vmem %s1, %s213
      %p215 = pneg %p84
      %p216 = pneg %p81
      %s217 = smul.u32 2, %s20
      %p218 = scmp.lt.s32.totalorder %s217, 1
      %s219 = scalar_select %p218, %s217, 1
      %s220 = scalar_lea.vmem %s2, %s219
      %p221 = pneg %p110
      %p222 = pneg %p107
      %p223 = pneg %p140
      %p224 = pneg %p137
      %s225 = smul.u32 2, %s20
      %p226 = scmp.lt.s32.totalorder %s19, 1
      %s227 = scalar_select %p226, %s19, 1
      %p228 = scmp.lt.s32.totalorder %s21, 0
      %s229 = scalar_select %p228, %s21, 0
      %p230 = scmp.lt.s32.totalorder %s225, 1
      %s231 = scalar_select %p230, %s225, 1
      %s232 = smul.addr %s229, 2
      %s233 = sadd.s32 %s231, %s232
      %s234 = smul.addr %s227, 2
      %s235 = sadd.s32 %s233, %s234
      %s236 = smul.addr %s235, 8
      %s237 = scalar_lea.vmem %s3, %s236
      %p238 = scmp.lt.s32.totalorder %s19, 1
      %s239 = scalar_select %p238, %s19, 1
      %p240 = scmp.lt.s32.totalorder %s21, 0
      %s241 = scalar_select %p240, %s21, 0
      %s242 = sadd.s32 %s241, %s239
      %s243 = smul.addr %s242, 8
      %s244 = scalar_lea.vmem %s0, %s243
      %s245 = smul.u32 2, %s20
      %p246 = scmp.lt.s32.totalorder %s19, 1
      %s247 = scalar_select %p246, %s19, 1
      %p248 = scmp.lt.s32.totalorder %s245, 1
      %s249 = scalar_select %p248, %s245, 1
      %s250 = smul.addr %s247, 4
      %s251 = sadd.s32 %s249, %s250
      %s252 = smul.addr %s251, 8
      %s253 = scalar_lea.vmem %s1, %s252
      %s254 = smul.u32 2, %s20
      %s255 = smul.u32 2, %s20
      %p256 = scmp.lt.s32.totalorder %s255, 1
      %s257 = scalar_select %p256, %s255, 1
      %s258 = scalar_lea.vmem %s2, %s257
      %s259 = smul.u32 2, %s20
      %s260 = smul.u32 2, %s20
      %p261 = scmp.lt.s32.totalorder %s19, 1
      %s262 = scalar_select %p261, %s19, 1
      %p263 = scmp.lt.s32.totalorder %s21, 0
      %s264 = scalar_select %p263, %s21, 0
      %p265 = scmp.lt.s32.totalorder %s260, 1
      %s266 = scalar_select %p265, %s260, 1
      %s267 = smul.addr %s264, 2
      %s268 = sadd.s32 %s266, %s267
      %s269 = smul.addr %s262, 2
      %s270 = sadd.s32 %s268, %s269
      %s271 = smul.addr %s270, 8
      %s272 = scalar_lea.vmem %s3, %s271
      %s273 = smul.u32 2, %s20
      %v274 = vld [vmem:[%s244] sm:$0xff]
      %v275 = vld [vmem:[%s253] sm:$0xff]
      %v276 = vld [vmem:[%s253 + $0x8] sm:$0xff]
      %v277 = vld [vmem:[%s253 + $0x10] sm:$0xff]
      %v278 = vld [vmem:[%s253 + $0x18] sm:$0xff]
      %v279 = vld [vmem:[%s258] sm:$0x3]
      %v281 = vperm.slane %v279, 0
      %v282 = vperm.slane %v279, 1
      %vm285 = vcmask 130048
      %v287 = vsel %vm285, %v274, 0
      %289 = vmatpush.msra.mxu0 0.0
      %290 = vmatpush.msra.mxu0 0.0
      %291 = vmatpush.msra.mxu0 0.0
      %292 = vmatpush.msra.mxu0 0.0
      %293 = vmatpush.msra.mxu0 0.0
      %294 = vmatpush.msra.mxu0 0.0
      %295 = vmatpush.msra.mxu0 0.0
      %296 = vmatpush.msra.mxu0 0.0
      %297 = vmatpush.msra.mxu0 0.0
      %298 = vmatpush.msra.mxu0 0.0
      %299 = vmatpush.msra.mxu0 0.0
      %300 = vmatpush.msra.mxu0 0.0
      %301 = vmatpush.msra.mxu0 0.0
      %302 = vmatpush.msra.mxu0 0.0
      %303 = vmatpush.msra.mxu0 %v277
      %304 = vmatpush.msra.mxu0 %v275
      %305 = vmatmul.f32.gmra.mxu0 %v287
      %v306 = vpop.f32.mrf.mxu0
      %v307 = vadd.f32 %v281, %v306
      %308 = vdwg.mxu0
      %309 = vmatpush.msra.mxu0 0.0
      %310 = vmatpush.msra.mxu0 0.0
      %311 = vmatpush.msra.mxu0 0.0
      %312 = vmatpush.msra.mxu0 0.0
      %313 = vmatpush.msra.mxu0 0.0
      %314 = vmatpush.msra.mxu0 0.0
      %315 = vmatpush.msra.mxu0 0.0
      %316 = vmatpush.msra.mxu0 0.0
      %317 = vmatpush.msra.mxu0 0.0
      %318 = vmatpush.msra.mxu0 0.0
      %319 = vmatpush.msra.mxu0 0.0
      %320 = vmatpush.msra.mxu0 0.0
      %321 = vmatpush.msra.mxu0 0.0
      %322 = vmatpush.msra.mxu0 0.0
      %323 = vmatpush.msra.mxu0 %v278
      %324 = vmatpush.msra.mxu0 %v276
      %325 = vmatmul.f32.gmra.mxu0 %v287
      %v326 = vpop.f32.mrf.mxu0
      %v327 = vadd.f32 %v282, %v326
      %328 = vdwg.mxu0
      %329 = vst [vmem:[%s272] sm:$0xff] %v307
      %330 = vst [vmem:[%s272 + $0x8] sm:$0xff] %v327
      %s331 = smul.u32 2, %s20
      %p332 = scmp.lt.s32.totalorder %s19, 1
      %s333 = scalar_select %p332, %s19, 1
      %p334 = scmp.lt.s32.totalorder %s21, 0
      %s335 = scalar_select %p334, %s21, 0
      %p336 = scmp.lt.s32.totalorder %s331, 1
      %s337 = scalar_select %p336, %s331, 1
      %s338 = smul.addr %s335, 2
      %s339 = sadd.s32 %s337, %s338
      %s340 = smul.addr %s333, 2
      %s341 = sadd.s32 %s339, %s340
      %s342 = smul.addr %s341, 8
      %s343 = scalar_lea.vmem %s3, %s342
      // Predicated region
      $region33: #{learned_outer_forward.3} parent=31 // pred_check
        %p344 = pneg %p137
      $region34: #{learned_outer_forward.3} parent=31 // pred_check_branch
        %346 = sbr.rel (%p344) target = $region36
      $region35: #{learned_outer_forward.3} parent=31 // pred_region
        %s347 = smul.u32 2, %s20
      $region36: #{learned_outer_forward.3} parent=31 // pred_fallthru
        _
    $region32: #{learned_outer_forward.3} parent=5 // pred_fallthru
      _
    %p348 = scmp.le.s32.totalorder 2, %s9
    // Predicated region
    $region37: #{learned_outer_forward.3} parent=5 // pred_check
      %p349 = pneg %p348
    $region38: #{learned_outer_forward.3} parent=5 // pred_check_branch
      %351 = sbr.rel (%p349) target = $region40
    $region39: #{learned_outer_forward.3} parent=5 // pred_region
      %s352 = ssub.s32 %s9, 2
      // Predicated region
      $region41: #{learned_outer_forward.3} parent=39 // pred_check
        %p353 = pneg %p143
      $region42: #{learned_outer_forward.3} parent=39 // pred_check_branch
        %355 = sbr.rel (%p353) target = $region44
      $region43: #{learned_outer_forward.3} parent=39 // pred_region
        %s356 = smul.u32 2, %s23
        %p357 = scmp.lt.s32.totalorder %s22, 1
        %s358 = scalar_select %p357, %s22, 1
        %p359 = scmp.lt.s32.totalorder %s24, 0
        %s360 = scalar_select %p359, %s24, 0
        %p361 = scmp.lt.s32.totalorder %s356, 1
        %s362 = scalar_select %p361, %s356, 1
        %s363 = smul.addr %s360, 2
        %s364 = sadd.s32 %s362, %s363
        %s365 = smul.addr %s358, 2
        %s366 = sadd.s32 %s364, %s365
        %s367 = smul.addr %s366, 8
        %s368 = scalar_lea.vmem %s3, %s367
      $region44: #{learned_outer_forward.3} parent=39 // pred_fallthru
        _
    $region40: #{learned_outer_forward.3} parent=5 // pred_fallthru
      _
  $region6: #{learned_outer_forward.3} parent=0 // loop_footer
    %s13 = sadd.s32 1, %s9
  $region7: #{learned_outer_forward.3} parent=0 // loop_footer_branch
    %8 = sbr.rel target = $region3
  $region8: #{learned_outer_forward.3} parent=0 // loop_exit
    _

// kernel: learned_outer_forward.2
$region0: #{learned_outer_forward.2}
  #allocation0 [shape = 'u32[]', space=smem, size = 0x4, offset = 0x4, fixed_abs, tag = 'smem constant byte address 0x4 - core index']
  #allocation1 [shape = 'u32[72,128]{1,0:T(1,128)}', space=vmem, size = 0x9000, scoped, tag = 'internal scratch']
  %s0 = inlined_call_operand.vmem [shape: f32[2,8,32], index: 0, kind: input, shape index: {}]
  %s1 = inlined_call_operand.vmem [shape: f32[1,32], index: 1, kind: input, shape index: {}]
  %s2 = inlined_call_operand.vmem [shape: f32[1,32], index: 2, kind: input, shape index: {}]
  %s3 = inlined_call_operand.vmem [shape: f32[32,16], index: 3, kind: input, shape index: {}]
  %s4 = inlined_call_operand.vmem [shape: f32[1,16], index: 4, kind: input, shape index: {}]
  %s5 = inlined_call_operand.vmem [shape: f32[32,16], index: 5, kind: input, shape index: {}]
  %s6 = inlined_call_operand.vmem [shape: f32[1,16], index: 6, kind: input, shape index: {}]
  %s7 = inlined_call_operand.vmem [shape: f32[16,512], index: 7, kind: input, shape index: {}]
  %s8 = inlined_call_operand.vmem [shape: f32[2,8,16], index: 8, kind: output, shape index: {0}]
  %s9 = inlined_call_operand.vmem [shape: f32[2,8,512], index: 9, kind: output, shape index: {1}]
  %10 = xla_tuple %s8, %s9
  %s11 = sld [smem:[#allocation0]]
  $region73: #{learned_outer_forward.2} parent=0
    _
  %s13 = ssub.s32 1, %s11
  %s14 = scalar_select 0, %s13, %s11
  loop: start=0, step=1, limit=4
  $region2: #{learned_outer_forward.2} parent=0 // loop_pre_header
    _
  $region3: #{learned_outer_forward.2} parent=0 // loop_header
    %s16 = sphi 0, %s20
    %p17 = scmp.ge.s32.totalorder %s16, 4
    %s23 = sphi 0, %s35
    %s24 = sphi 0, %s31
    %s25 = sphi 0, %s23
    %s26 = sphi 0, %s24
    %s27 = sphi 0, %s25
    %s28 = sphi 0, %s26
    %s40 = sphi 0, %s42
    %s43 = sphi 0, %s40
    %s44 = sphi 0, %s43
    %s60 = sphi 0, %s44
    %s64 = sphi 0, %s64
    %s66 = sphi 0, %s64
    %s67 = sphi 0, %s66
    %s81 = sphi 0, %s67
    %s85 = sphi 0, %s85
    %s87 = sphi 0, %s85
    %s88 = sphi 0, %s87
    %s102 = sphi 0, %s88
    %s106 = sphi 0, %s106
    %s108 = sphi 0, %s106
    %s109 = sphi 0, %s108
    %s123 = sphi 0, %s109
    %s127 = sphi 0, %s127
    %s129 = sphi 0, %s127
    %s130 = sphi 0, %s129
    %s144 = sphi 0, %s130
    %s148 = sphi 0, %s148
    %s150 = sphi 0, %s148
    %s151 = sphi 0, %s150
    %s165 = sphi 0, %s151
    %s169 = sphi 0, %s169
    %s171 = sphi 0, %s169
    %s172 = sphi 0, %s171
    %s186 = sphi 0, %s172
    %s190 = sphi 0, %s190
    %s192 = sphi 0, %s190
    %s193 = sphi 0, %s192
    %s207 = sphi 0, %s193
    %s215 = sphi 0, %s217
    %s218 = sphi 0, %s215
    %s219 = sphi 0, %s218
    %s235 = sphi 0, %s219
    %s243 = sphi 0, %s245
    %s246 = sphi 0, %s243
    %s247 = sphi 0, %s246
    %s263 = sphi 0, %s247
  $region4: #{learned_outer_forward.2} parent=0 // loop_header_branch
    %19 = sbr.rel (%p17) target = $region8
  $region5: #{learned_outer_forward.2} parent=0 // loop_body
    %s21 = ssub.s32 %s16, 1
    %s22 = ssub.s32 %s16, 2
    %s29 = sadd.s32 1, %s24
    %p30 = scmp.ge.s32.totalorder %s29, 1
    %s31 = scalar_select %p30, 0, %s29
    %s32 = sadd.s32 1, %s23
    %s33 = scalar_select %p30, %s32, %s23
    %p34 = scmp.ge.s32.totalorder %s33, 2
    %s35 = scalar_select %p34, 0, %s33
    %s36 = ssub.s32 %s23, %s35
    %s37 = ssub.s32 %s24, %s31
    %s38 = sor.u32 %s36, %s37
    %p39 = scmp.eq.s32.totalorder %s38, 0
    %s41 = sadd.s32 %s40, 1
    %s42 = scalar_select %p39, %s40, %s41
    %p45 = pneg %p39
    %p46 = scmp.eq.s32.totalorder %s16, 1
    %p47 = por %p45, %p46
    %p48 = scmp.ne.s32.totalorder %s40, %s43
    %p49 = scmp.eq.s32.totalorder %s16, 0
    %p50 = por %p48, %p49
    %p51 = scmp.ne.s32.totalorder %s40, %s43
    %p52 = scmp.eq.s32.totalorder %s21, 1
    %p53 = por %p51, %p52
    %p54 = scmp.ne.s32.totalorder %s43, %s44
    %p55 = scmp.eq.s32.totalorder %s21, 0
    %p56 = por %p54, %p55
    %p57 = scmp.ne.s32.totalorder %s43, %s44
    %p58 = scmp.eq.s32.totalorder %s22, 1
    %p59 = por %p57, %p58
    %p61 = scmp.ne.s32.totalorder %s44, %s60
    %p62 = scmp.eq.s32.totalorder %s22, 0
    %p63 = por %p61, %p62
    %s65 = sadd.s32 %s64, 1
    %p68 = scmp.eq.s32.totalorder %s16, 1
    %p69 = scmp.ne.s32.totalorder %s64, %s66
    %p70 = scmp.eq.s32.totalorder %s16, 0
    %p71 = por %p69, %p70
    %p72 = scmp.ne.s32.totalorder %s64, %s66
    %p73 = scmp.eq.s32.totalorder %s21, 1
    %p74 = por %p72, %p73
    %p75 = scmp.ne.s32.totalorder %s66, %s67
    %p76 = scmp.eq.s32.totalorder %s21, 0
    %p77 = por %p75, %p76
    %p78 = scmp.ne.s32.totalorder %s66, %s67
    %p79 = scmp.eq.s32.totalorder %s22, 1
    %p80 = por %p78, %p79
    %p82 = scmp.ne.s32.totalorder %s67, %s81
    %p83 = scmp.eq.s32.totalorder %s22, 0
    %p84 = por %p82, %p83
    %s86 = sadd.s32 %s85, 1
    %p89 = scmp.eq.s32.totalorder %s16, 1
    %p90 = scmp.ne.s32.totalorder %s85, %s87
    %p91 = scmp.eq.s32.totalorder %s16, 0
    %p92 = por %p90, %p91
    %p93 = scmp.ne.s32.totalorder %s85, %s87
    %p94 = scmp.eq.s32.totalorder %s21, 1
    %p95 = por %p93, %p94
    %p96 = scmp.ne.s32.totalorder %s87, %s88
    %p97 = scmp.eq.s32.totalorder %s21, 0
    %p98 = por %p96, %p97
    %p99 = scmp.ne.s32.totalorder %s87, %s88
    %p100 = scmp.eq.s32.totalorder %s22, 1
    %p101 = por %p99, %p100
    %p103 = scmp.ne.s32.totalorder %s88, %s102
    %p104 = scmp.eq.s32.totalorder %s22, 0
    %p105 = por %p103, %p104
    %s107 = sadd.s32 %s106, 1
    %p110 = scmp.eq.s32.totalorder %s16, 1
    %p111 = scmp.ne.s32.totalorder %s106, %s108
    %p112 = scmp.eq.s32.totalorder %s16, 0
    %p113 = por %p111, %p112
    %p114 = scmp.ne.s32.totalorder %s106, %s108
    %p115 = scmp.eq.s32.totalorder %s21, 1
    %p116 = por %p114, %p115
    %p117 = scmp.ne.s32.totalorder %s108, %s109
    %p118 = scmp.eq.s32.totalorder %s21, 0
    %p119 = por %p117, %p118
    %p120 = scmp.ne.s32.totalorder %s108, %s109
    %p121 = scmp.eq.s32.totalorder %s22, 1
    %p122 = por %p120, %p121
    %p124 = scmp.ne.s32.totalorder %s109, %s123
    %p125 = scmp.eq.s32.totalorder %s22, 0
    %p126 = por %p124, %p125
    %s128 = sadd.s32 %s127, 1
    %p131 = scmp.eq.s32.totalorder %s16, 1
    %p132 = scmp.ne.s32.totalorder %s127, %s129
    %p133 = scmp.eq.s32.totalorder %s16, 0
    %p134 = por %p132, %p133
    %p135 = scmp.ne.s32.totalorder %s127, %s129
    %p136 = scmp.eq.s32.totalorder %s21, 1
    %p137 = por %p135, %p136
    %p138 = scmp.ne.s32.totalorder %s129, %s130
    %p139 = scmp.eq.s32.totalorder %s21, 0
    %p140 = por %p138, %p139
    %p141 = scmp.ne.s32.totalorder %s129, %s130
    %p142 = scmp.eq.s32.totalorder %s22, 1
    %p143 = por %p141, %p142
    %p145 = scmp.ne.s32.totalorder %s130, %s144
    %p146 = scmp.eq.s32.totalorder %s22, 0
    %p147 = por %p145, %p146
    %s149 = sadd.s32 %s148, 1
    %p152 = scmp.eq.s32.totalorder %s16, 1
    %p153 = scmp.ne.s32.totalorder %s148, %s150
    %p154 = scmp.eq.s32.totalorder %s16, 0
    %p155 = por %p153, %p154
    %p156 = scmp.ne.s32.totalorder %s148, %s150
    %p157 = scmp.eq.s32.totalorder %s21, 1
    %p158 = por %p156, %p157
    %p159 = scmp.ne.s32.totalorder %s150, %s151
    %p160 = scmp.eq.s32.totalorder %s21, 0
    %p161 = por %p159, %p160
    %p162 = scmp.ne.s32.totalorder %s150, %s151
    %p163 = scmp.eq.s32.totalorder %s22, 1
    %p164 = por %p162, %p163
    %p166 = scmp.ne.s32.totalorder %s151, %s165
    %p167 = scmp.eq.s32.totalorder %s22, 0
    %p168 = por %p166, %p167
    %s170 = sadd.s32 %s169, 1
    %p173 = scmp.eq.s32.totalorder %s16, 1
    %p174 = scmp.ne.s32.totalorder %s169, %s171
    %p175 = scmp.eq.s32.totalorder %s16, 0
    %p176 = por %p174, %p175
    %p177 = scmp.ne.s32.totalorder %s169, %s171
    %p178 = scmp.eq.s32.totalorder %s21, 1
    %p179 = por %p177, %p178
    %p180 = scmp.ne.s32.totalorder %s171, %s172
    %p181 = scmp.eq.s32.totalorder %s21, 0
    %p182 = por %p180, %p181
    %p183 = scmp.ne.s32.totalorder %s171, %s172
    %p184 = scmp.eq.s32.totalorder %s22, 1
    %p185 = por %p183, %p184
    %p187 = scmp.ne.s32.totalorder %s172, %s186
    %p188 = scmp.eq.s32.totalorder %s22, 0
    %p189 = por %p187, %p188
    %s191 = sadd.s32 %s190, 1
    %p194 = scmp.eq.s32.totalorder %s16, 1
    %p195 = scmp.ne.s32.totalorder %s190, %s192
    %p196 = scmp.eq.s32.totalorder %s16, 0
    %p197 = por %p195, %p196
    %p198 = scmp.ne.s32.totalorder %s190, %s192
    %p199 = scmp.eq.s32.totalorder %s21, 1
    %p200 = por %p198, %p199
    %p201 = scmp.ne.s32.totalorder %s192, %s193
    %p202 = scmp.eq.s32.totalorder %s21, 0
    %p203 = por %p201, %p202
    %p204 = scmp.ne.s32.totalorder %s192, %s193
    %p205 = scmp.eq.s32.totalorder %s22, 1
    %p206 = por %p204, %p205
    %p208 = scmp.ne.s32.totalorder %s193, %s207
    %p209 = scmp.eq.s32.totalorder %s22, 0
    %p210 = por %p208, %p209
    %s211 = ssub.s32 %s23, %s35
    %s212 = ssub.s32 %s24, %s31
    %s213 = sor.u32 %s211, %s212
    %p214 = scmp.eq.s32.totalorder %s213, 0
    %s216 = sadd.s32 %s215, 1
    %s217 = scalar_select %p214, %s215, %s216
    %p220 = pneg %p214
    %p221 = scmp.eq.s32.totalorder %s16, 1
    %p222 = por %p220, %p221
    %p223 = scmp.ne.s32.totalorder %s215, %s218
    %p224 = scmp.eq.s32.totalorder %s16, 0
    %p225 = por %p223, %p224
    %p226 = scmp.ne.s32.totalorder %s215, %s218
    %p227 = scmp.eq.s32.totalorder %s21, 1
    %p228 = por %p226, %p227
    %p229 = scmp.ne.s32.totalorder %s218, %s219
    %p230 = scmp.eq.s32.totalorder %s21, 0
    %p231 = por %p229, %p230
    %p232 = scmp.ne.s32.totalorder %s218, %s219
    %p233 = scmp.eq.s32.totalorder %s22, 1
    %p234 = por %p232, %p233
    %p236 = scmp.ne.s32.totalorder %s219, %s235
    %p237 = scmp.eq.s32.totalorder %s22, 0
    %p238 = por %p236, %p237
    %s239 = ssub.s32 %s23, %s35
    %s240 = ssub.s32 %s24, %s31
    %s241 = sor.u32 %s239, %s240
    %p242 = scmp.eq.s32.totalorder %s241, 0
    %s244 = sadd.s32 %s243, 1
    %s245 = scalar_select %p242, %s243, %s244
    %p248 = pneg %p242
    %p249 = scmp.eq.s32.totalorder %s16, 1
    %p250 = por %p248, %p249
    %p251 = scmp.ne.s32.totalorder %s243, %s246
    %p252 = scmp.eq.s32.totalorder %s16, 0
    %p253 = por %p251, %p252
    %p254 = scmp.ne.s32.totalorder %s243, %s246
    %p255 = scmp.eq.s32.totalorder %s21, 1
    %p256 = por %p254, %p255
    %p257 = scmp.ne.s32.totalorder %s246, %s247
    %p258 = scmp.eq.s32.totalorder %s21, 0
    %p259 = por %p257, %p258
    %p260 = scmp.ne.s32.totalorder %s246, %s247
    %p261 = scmp.eq.s32.totalorder %s22, 1
    %p262 = por %p260, %p261
    %p264 = scmp.ne.s32.totalorder %s247, %s263
    %p265 = scmp.eq.s32.totalorder %s22, 0
    %p266 = por %p264, %p265
    %p267 = scmp.le.s32.totalorder 1, %s16
    %p268 = scmp.lt.s32.totalorder %s16, 3
    %p269 = pnand %p267, %p268
    %p270 = pneg %p269
    // Predicated region
    $region9: #{learned_outer_forward.2} parent=5 // pred_check
      _
    $region10: #{learned_outer_forward.2} parent=5 // pred_check_branch
      %272 = sbr.rel (%p269) target = $region12
    $region11: #{learned_outer_forward.2} parent=5 // pred_region
      %s273 = ssub.s32 %s16, 1
      // Predicated region
      $region13: #{learned_outer_forward.2} parent=11 // pred_check
        %p274 = pneg %p77
      $region14: #{learned_outer_forward.2} parent=11 // pred_check_branch
        %276 = sbr.rel (%p274) target = $region16
      $region15: #{learned_outer_forward.2} parent=11 // pred_region
        _
      $region16: #{learned_outer_forward.2} parent=11 // pred_fallthru
        _
      // Predicated region
      $region17: #{learned_outer_forward.2} parent=11 // pred_check
        %p277 = pneg %p98
      $region18: #{learned_outer_forward.2} parent=11 // pred_check_branch
        %279 = sbr.rel (%p277) target = $region20
      $region19: #{learned_outer_forward.2} parent=11 // pred_region
        _
      $region20: #{learned_outer_forward.2} parent=11 // pred_fallthru
        _
      // Predicated region
      $region21: #{learned_outer_forward.2} parent=11 // pred_check
        %p280 = pneg %p119
      $region22: #{learned_outer_forward.2} parent=11 // pred_check_branch
        %282 = sbr.rel (%p280) target = $region24
      $region23: #{learned_outer_forward.2} parent=11 // pred_region
        _
      $region24: #{learned_outer_forward.2} parent=11 // pred_fallthru
        _
      // Predicated region
      $region25: #{learned_outer_forward.2} parent=11 // pred_check
        %p283 = pneg %p140
      $region26: #{learned_outer_forward.2} parent=11 // pred_check_branch
        %285 = sbr.rel (%p283) target = $region28
      $region27: #{learned_outer_forward.2} parent=11 // pred_region
        _
      $region28: #{learned_outer_forward.2} parent=11 // pred_fallthru
        _
      // Predicated region
      $region29: #{learned_outer_forward.2} parent=11 // pred_check
        %p286 = pneg %p161
      $region30: #{learned_outer_forward.2} parent=11 // pred_check_branch
        %288 = sbr.rel (%p286) target = $region32
      $region31: #{learned_outer_forward.2} parent=11 // pred_region
        _
      $region32: #{learned_outer_forward.2} parent=11 // pred_fallthru
        _
      // Predicated region
      $region33: #{learned_outer_forward.2} parent=11 // pred_check
        %p289 = pneg %p182
      $region34: #{learned_outer_forward.2} parent=11 // pred_check_branch
        %291 = sbr.rel (%p289) target = $region36
      $region35: #{learned_outer_forward.2} parent=11 // pred_region
        _
      $region36: #{learned_outer_forward.2} parent=11 // pred_fallthru
        _
      // Predicated region
      $region37: #{learned_outer_forward.2} parent=11 // pred_check
        %p292 = pneg %p203
      $region38: #{learned_outer_forward.2} parent=11 // pred_check_branch
        %294 = sbr.rel (%p292) target = $region40
      $region39: #{learned_outer_forward.2} parent=11 // pred_region
        _
      $region40: #{learned_outer_forward.2} parent=11 // pred_fallthru
        _
    $region12: #{learned_outer_forward.2} parent=5 // pred_fallthru
      _
    %p295 = scmp.lt.s32.totalorder %s16, 2
    // Predicated region
    $region41: #{learned_outer_forward.2} parent=5 // pred_check
      %p296 = pneg %p295
    $region42: #{learned_outer_forward.2} parent=5 // pred_check_branch
      %298 = sbr.rel (%p296) target = $region44
    $region43: #{learned_outer_forward.2} parent=5 // pred_region
      // Predicated region
      $region45: #{learned_outer_forward.2} parent=43 // pred_check
        %p299 = pneg %p50
      $region46: #{learned_outer_forward.2} parent=43 // pred_check_branch
        %301 = sbr.rel (%p299) target = $region48
      $region47: #{learned_outer_forward.2} parent=43 // pred_region
        %p302 = scmp.lt.s32.totalorder %s23, 1
        %s303 = scalar_select %p302, %s23, 1
        %p304 = scmp.lt.s32.totalorder %s24, 0
        %s305 = scalar_select %p304, %s24, 0
        %s306 = sadd.s32 %s305, %s303
        %s307 = smul.addr %s306, 8
        %s308 = scalar_lea.vmem %s0, %s307
      $region48: #{learned_outer_forward.2} parent=43 // pred_fallthru
        _
    $region44: #{learned_outer_forward.2} parent=5 // pred_fallthru
      _
    %p309 = scmp.le.s32.totalorder 1, %s16
    %p310 = scmp.lt.s32.totalorder %s16, 3
    %p311 = pnand %p309, %p310
    %p312 = pneg %p311
    // Predicated region
    $region49: #{learned_outer_forward.2} parent=5 // pred_check
      _
    $region50: #{learned_outer_forward.2} parent=5 // pred_check_branch
      %314 = sbr.rel (%p311) target = $region52
    $region51: #{learned_outer_forward.2} parent=5 // pred_region
      %s315 = ssub.s32 %s16, 1
      %p316 = scmp.lt.s32.totalorder %s25, 1
      %s317 = scalar_select %p316, %s25, 1
      %p318 = scmp.lt.s32.totalorder %s26, 0
      %s319 = scalar_select %p318, %s26, 0
      %s320 = sadd.s32 %s319, %s317
      %s321 = smul.addr %s320, 8
      %s322 = scalar_lea.vmem %s0, %s321
      %p323 = pneg %p56
      %p324 = pneg %p53
      %p325 = pneg %p77
      %p326 = pneg %p74
      %p327 = pneg %p98
      %p328 = pneg %p95
      %p329 = pneg %p119
      %p330 = pneg %p116
      %p331 = pneg %p140
      %p332 = pneg %p137
      %p333 = pneg %p161
      %p334 = pneg %p158
      %p335 = pneg %p182
      %p336 = pneg %p179
      %p337 = pneg %p203
      %p338 = pneg %p200
      %p339 = pneg %p231
      %p340 = pneg %p228
      %p341 = scmp.lt.s32.totalorder %s25, 1
      %s342 = scalar_select %p341, %s25, 1
      %p343 = scmp.lt.s32.totalorder %s26, 0
      %s344 = scalar_select %p343, %s26, 0
      %s345 = sadd.s32 %s344, %s342
      %s346 = smul.addr %s345, 8
      %s347 = scalar_lea.vmem %s8, %s346
      %p348 = pneg %p259
      %p349 = pneg %p256
      %p350 = scmp.lt.s32.totalorder %s25, 1
      %s351 = scalar_select %p350, %s25, 1
      %p352 = scmp.lt.s32.totalorder %s26, 0
      %s353 = scalar_select %p352, %s26, 0
      %s354 = smul.addr %s353, 4
      %s355 = smul.addr %s351, 4
      %s356 = sadd.s32 %s354, %s355
      %s357 = smul.addr %s356, 8
      %s358 = scalar_lea.vmem %s9, %s357
      %p359 = scmp.lt.s32.totalorder %s25, 1
      %s360 = scalar_select %p359, %s25, 1
      %p361 = scmp.lt.s32.totalorder %s26, 0
      %s362 = scalar_select %p361, %s26, 0
      %s363 = sadd.s32 %s362, %s360
      %s364 = smul.addr %s363, 8
      %s365 = scalar_lea.vmem %s0, %s364
      %p366 = scmp.lt.s32.totalorder %s25, 1
      %s367 = scalar_select %p366, %s25, 1
      %p368 = scmp.lt.s32.totalorder %s26, 0
      %s369 = scalar_select %p368, %s26, 0
      %s370 = sadd.s32 %s369, %s367
      %s371 = smul.addr %s370, 8
      %s372 = scalar_lea.vmem %s8, %s371
      %p373 = scmp.lt.s32.totalorder %s25, 1
      %s374 = scalar_select %p373, %s25, 1
      %p375 = scmp.lt.s32.totalorder %s26, 0
      %s376 = scalar_select %p375, %s26, 0
      %s377 = smul.addr %s376, 4
      %s378 = smul.addr %s374, 4
      %s379 = sadd.s32 %s377, %s378
      %s380 = smul.addr %s379, 8
      %s381 = scalar_lea.vmem %s9, %s380
      %v382 = vld [vmem:[%s365] sm:$0xff]
      %vm383 = vcmask 261120
      %v384 = vsel %vm383, %v382, 0.0
      %385 = vadd.xlane.f32.xlu0 %v384
      %v386 = vpop.xlane.xlu0 %385
      %v387 = vrcp.pop 32.0
      %v388 = vmul.f32 32.0, %v387
      %v389 = vsub.f32 1.0, %v388
      %v390 = vmul.f32 %v387, %v389
      %v391 = vadd.f32 %v387, %v390
      %vm392 = vweird.f32 %v387
      %v393 = vsel %vm392, %v387, %v391
      %v394 = vmul.f32 %v386, %v393
      %v395 = vsub.f32 %v382, %v394
      %v396 = vmul.f32 %v395, %v395
      %v397 = vsel %vm383, %v396, 0.0
      %398 = vadd.xlane.f32.xlu0 %v397
      %v399 = vpop.xlane.xlu0 %398
      %v400 = vmul.f32 %v399, %v393
      %v401 = vadd.f32 %v400, 1e-05
      %v402 = vrsqrt.pop %v401
      %v403 = vmul.f32 %v402, %v401
      %v404 = vmul.f32 %v403, %v402
      %v405 = vmul.f32 0.5, %v404
      %v406 = vsub.f32 1.5, %v405
      %v407 = vmul.f32 %v402, %v406
      %vm408 = vweird.f32 %v401
      %vm409 = vweird.f32 %v402
      %vm410 = vmor %vm408, %vm409
      %v411 = vsel %vm410, %v402, %v407
      %v412 = vmul.f32 %v395, %v411
      %v413 = vld [vmem:[%s1] sm:$0x1]
      %v415 = vperm.slane %v413, 0
      %v417 = vmul.f32 %v412, %v415
      %v418 = vld [vmem:[%s2] sm:$0x1]
      %v420 = vperm.slane %v418, 0
      %v422 = vadd.f32 %v417, %v420
      %v423 = vld [vmem:[%s3] sm:$0xff]
      %v424 = vld [vmem:[%s3 + $0x8] sm:$0xff]
      %v425 = vld [vmem:[%s3 + $0x10] sm:$0xff]
      %v426 = vld [vmem:[%s3 + $0x18] sm:$0xff]
      %v427 = vld [vmem:[%s4] sm:$0x1]
      %v429 = vperm.slane %v427, 0
      %v432 = vsel %vm383, %v422, 0
      %434 = vmatpush.msra.mxu0 0.0
      %435 = vmatpush.msra.mxu0 0.0
      %436 = vmatpush.msra.mxu0 0.0
      %437 = vmatpush.msra.mxu0 0.0
      %438 = vmatpush.msra.mxu0 0.0
      %439 = vmatpush.msra.mxu0 0.0
      %440 = vmatpush.msra.mxu0 0.0
      %441 = vmatpush.msra.mxu0 0.0
      %442 = vmatpush.msra.mxu0 0.0
      %443 = vmatpush.msra.mxu0 0.0
      %444 = vmatpush.msra.mxu0 0.0
      %445 = vmatpush.msra.mxu0 0.0
      %446 = vmatpush.msra.mxu0 %v426
      %447 = vmatpush.msra.mxu0 %v425
      %448 = vmatpush.msra.mxu0 %v424
      %449 = vmatpush.msra.mxu0 %v423
      %450 = vmatmul.f32.gmra.mxu0 %v432
      %v451 = vpop.f32.mrf.mxu0
      %v452 = vadd.f32 %v429, %v451
      %453 = vdwg.mxu0
      %vm454 = vcmask 130048
      %455 = vst.msk [vmem:[%s372] sm:$0xff] %vm454, %v452
      %v456 = vld [vmem:[%s5] sm:$0xff]
      %v457 = vld [vmem:[%s5 + $0x8] sm:$0xff]
      %v458 = vld [vmem:[%s5 + $0x10] sm:$0xff]
      %v459 = vld [vmem:[%s5 + $0x18] sm:$0xff]
      %v460 = vld [vmem:[%s6] sm:$0x1]
      %v462 = vperm.slane %v460, 0
      %464 = vmatpush.msra.mxu0 0.0
      %465 = vmatpush.msra.mxu0 0.0
      %466 = vmatpush.msra.mxu0 0.0
      %467 = vmatpush.msra.mxu0 0.0
      %468 = vmatpush.msra.mxu0 0.0
      %469 = vmatpush.msra.mxu0 0.0
      %470 = vmatpush.msra.mxu0 0.0
      %471 = vmatpush.msra.mxu0 0.0
      %472 = vmatpush.msra.mxu0 0.0
      %473 = vmatpush.msra.mxu0 0.0
      %474 = vmatpush.msra.mxu0 0.0
      %475 = vmatpush.msra.mxu0 0.0
      %476 = vmatpush.msra.mxu0 %v459
      %477 = vmatpush.msra.mxu0 %v458
      %478 = vmatpush.msra.mxu0 %v457
      %479 = vmatpush.msra.mxu0 %v456
      %480 = vmatmul.f32.gmra.mxu0 %v432
      %v481 = vpop.f32.mrf.mxu0
      %v482 = vadd.f32 %v462, %v481
      %483 = vdwg.mxu0
      %v484 = vld [vmem:[%s7] sm:$0xff]
      %v485 = vld [vmem:[%s7 + $0x8] sm:$0xff]
      %v486 = vld [vmem:[%s7 + $0x10] sm:$0xff]
      %v487 = vld [vmem:[%s7 + $0x18] sm:$0xff]
      %v488 = vld [vmem:[%s7 + $0x20] sm:$0xff]
      %v489 = vld [vmem:[%s7 + $0x28] sm:$0xff]
      %v490 = vld [vmem:[%s7 + $0x30] sm:$0xff]
      %v491 = vld [vmem:[%s7 + $0x38] sm:$0xff]
      %v493 = vsel %vm454, %v482, 0
      %495 = vmatpush.msra.mxu0 0.0
      %496 = vmatpush.msra.mxu0 0.0
      %497 = vmatpush.msra.mxu0 0.0
      %498 = vmatpush.msra.mxu0 0.0
      %499 = vmatpush.msra.mxu0 0.0
      %500 = vmatpush.msra.mxu0 0.0
      %501 = vmatpush.msra.mxu0 0.0
      %502 = vmatpush.msra.mxu0 0.0
      %503 = vmatpush.msra.mxu0 0.0
      %504 = vmatpush.msra.mxu0 0.0
      %505 = vmatpush.msra.mxu0 0.0
      %506 = vmatpush.msra.mxu0 0.0
      %507 = vmatpush.msra.mxu0 0.0
      %508 = vmatpush.msra.mxu0 0.0
      %509 = vmatpush.msra.mxu0 %v488
      %510 = vmatpush.msra.mxu0 %v484
      %511 = vmatmul.f32.gmra.mxu0 %v493
      %v512 = vpop.f32.mrf.mxu0
      %v513 = vadd.f32 0.0, %v512
      %514 = vdwg.mxu0
      %515 = vmatpush.msra.mxu0 0.0
      %516 = vmatpush.msra.mxu0 0.0
      %517 = vmatpush.msra.mxu0 0.0
      %518 = vmatpush.msra.mxu0 0.0
      %519 = vmatpush.msra.mxu0 0.0
      %520 = vmatpush.msra.mxu0 0.0
      %521 = vmatpush.msra.mxu0 0.0
      %522 = vmatpush.msra.mxu0 0.0
      %523 = vmatpush.msra.mxu0 0.0
      %524 = vmatpush.msra.mxu0 0.0
      %525 = vmatpush.msra.mxu0 0.0
      %526 = vmatpush.msra.mxu0 0.0
      %527 = vmatpush.msra.mxu0 0.0
      %528 = vmatpush.msra.mxu0 0.0
      %529 = vmatpush.msra.mxu0 %v489
      %530 = vmatpush.msra.mxu0 %v485
      %531 = vmatmul.f32.gmra.mxu0 %v493
      %v532 = vpop.f32.mrf.mxu0
      %v533 = vadd.f32 0.0, %v532
      %534 = vdwg.mxu0
      %535 = vmatpush.msra.mxu0 0.0
      %536 = vmatpush.msra.mxu0 0.0
      %537 = vmatpush.msra.mxu0 0.0
      %538 = vmatpush.msra.mxu0 0.0
      %539 = vmatpush.msra.mxu0 0.0
      %540 = vmatpush.msra.mxu0 0.0
      %541 = vmatpush.msra.mxu0 0.0
      %542 = vmatpush.msra.mxu0 0.0
      %543 = vmatpush.msra.mxu0 0.0
      %544 = vmatpush.msra.mxu0 0.0
      %545 = vmatpush.msra.mxu0 0.0
      %546 = vmatpush.msra.mxu0 0.0
      %547 = vmatpush.msra.mxu0 0.0
      %548 = vmatpush.msra.mxu0 0.0
      %549 = vmatpush.msra.mxu0 %v490
      %550 = vmatpush.msra.mxu0 %v486
      %551 = vmatmul.f32.gmra.mxu0 %v493
      %v552 = vpop.f32.mrf.mxu0
      %v553 = vadd.f32 0.0, %v552
      %554 = vdwg.mxu0
      %555 = vmatpush.msra.mxu0 0.0
      %556 = vmatpush.msra.mxu0 0.0
      %557 = vmatpush.msra.mxu0 0.0
      %558 = vmatpush.msra.mxu0 0.0
      %559 = vmatpush.msra.mxu0 0.0
      %560 = vmatpush.msra.mxu0 0.0
      %561 = vmatpush.msra.mxu0 0.0
      %562 = vmatpush.msra.mxu0 0.0
      %563 = vmatpush.msra.mxu0 0.0
      %564 = vmatpush.msra.mxu0 0.0
      %565 = vmatpush.msra.mxu0 0.0
      %566 = vmatpush.msra.mxu0 0.0
      %567 = vmatpush.msra.mxu0 0.0
      %568 = vmatpush.msra.mxu0 0.0
      %569 = vmatpush.msra.mxu0 %v491
      %570 = vmatpush.msra.mxu0 %v487
      %571 = vmatmul.f32.gmra.mxu0 %v493
      %v572 = vpop.f32.mrf.mxu0
      %v573 = vadd.f32 0.0, %v572
      %574 = vdwg.mxu0
      %575 = vst [vmem:[%s381] sm:$0xff] %v513
      %576 = vst [vmem:[%s381 + $0x8] sm:$0xff] %v533
      %577 = vst [vmem:[%s381 + $0x10] sm:$0xff] %v553
      %578 = vst [vmem:[%s381 + $0x18] sm:$0xff] %v573
      %p579 = scmp.lt.s32.totalorder %s25, 1
      %s580 = scalar_select %p579, %s25, 1
      %p581 = scmp.lt.s32.totalorder %s26, 0
      %s582 = scalar_select %p581, %s26, 0
      %s583 = sadd.s32 %s582, %s580
      %s584 = smul.addr %s583, 8
      %s585 = scalar_lea.vmem %s8, %s584
      %p586 = scmp.lt.s32.totalorder %s25, 1
      %s587 = scalar_select %p586, %s25, 1
      %p588 = scmp.lt.s32.totalorder %s26, 0
      %s589 = scalar_select %p588, %s26, 0
      %s590 = smul.addr %s589, 4
      %s591 = smul.addr %s587, 4
      %s592 = sadd.s32 %s590, %s591
      %s593 = smul.addr %s592, 8
      %s594 = scalar_lea.vmem %s9, %s593
      // Predicated region
      $region53: #{learned_outer_forward.2} parent=51 // pred_check
        %p595 = pneg %p228
      $region54: #{learned_outer_forward.2} parent=51 // pred_check_branch
        %597 = sbr.rel (%p595) target = $region56
      $region55: #{learned_outer_forward.2} parent=51 // pred_region
        _
      $region56: #{learned_outer_forward.2} parent=51 // pred_fallthru
        _
      // Predicated region
      $region57: #{learned_outer_forward.2} parent=51 // pred_check
        %p598 = pneg %p256
      $region58: #{learned_outer_forward.2} parent=51 // pred_check_branch
        %600 = sbr.rel (%p598) target = $region60
      $region59: #{learned_outer_forward.2} parent=51 // pred_region
        _
      $region60: #{learned_outer_forward.2} parent=51 // pred_fallthru
        _
    $region52: #{learned_outer_forward.2} parent=5 // pred_fallthru
      _
    %p601 = scmp.le.s32.totalorder 2, %s16
    // Predicated region
    $region61: #{learned_outer_forward.2} parent=5 // pred_check
      %p602 = pneg %p601
    $region62: #{learned_outer_forward.2} parent=5 // pred_check_branch
      %604 = sbr.rel (%p602) target = $region64
    $region63: #{learned_outer_forward.2} parent=5 // pred_region
      %s605 = ssub.s32 %s16, 2
      // Predicated region
      $region65: #{learned_outer_forward.2} parent=63 // pred_check
        %p606 = pneg %p234
      $region66: #{learned_outer_forward.2} parent=63 // pred_check_branch
        %608 = sbr.rel (%p606) target = $region68
      $region67: #{learned_outer_forward.2} parent=63 // pred_region
        %p609 = scmp.lt.s32.totalorder %s27, 1
        %s610 = scalar_select %p609, %s27, 1
        %p611 = scmp.lt.s32.totalorder %s28, 0
        %s612 = scalar_select %p611, %s28, 0
        %s613 = sadd.s32 %s612, %s610
        %s614 = smul.addr %s613, 8
        %s615 = scalar_lea.vmem %s8, %s614
      $region68: #{learned_outer_forward.2} parent=63 // pred_fallthru
        _
      // Predicated region
      $region69: #{learned_outer_forward.2} parent=63 // pred_check
        %p616 = pneg %p262
      $region70: #{learned_outer_forward.2} parent=63 // pred_check_branch
        %618 = sbr.rel (%p616) target = $region72
      $region71: #{learned_outer_forward.2} parent=63 // pred_region
        %p619 = scmp.lt.s32.totalorder %s27, 1
        %s620 = scalar_select %p619, %s27, 1
        %p621 = scmp.lt.s32.totalorder %s28, 0
        %s622 = scalar_select %p621, %s28, 0
        %s623 = smul.addr %s622, 4
        %s624 = smul.addr %s620, 4
        %s625 = sadd.s32 %s623, %s624
        %s626 = smul.addr %s625, 8
        %s627 = scalar_lea.vmem %s9, %s626
      $region72: #{learned_outer_forward.2} parent=63 // pred_fallthru
        _
    $region64: #{learned_outer_forward.2} parent=5 // pred_fallthru
      _
  $region6: #{learned_outer_forward.2} parent=0 // loop_footer
    %s20 = sadd.s32 1, %s16
  $region7: #{learned_outer_forward.2} parent=0 // loop_footer_branch
    %15 = sbr.rel target = $region3
  $region8: #{learned_outer_forward.2} parent=0 // loop_exit
    _

</llo_original>
